<compile_context>
chip_gen: v5e
topology: v5e:2x2
jax: 0.10.0
libtpu: 0.0.40
codegen_flags: <defaults>
</compile_context>

<pallas_src>
import jax
import jax.numpy as jnp
from jax.experimental import pallas as pl
from jax.experimental.pallas import tpu as pltpu


def _round_up(x, m):
    return (x + m - 1) // m * m


def _sublane_min(dtype):
    # f32 -> 8, bf16 -> 16, int8/fp8 -> 32 sublanes per packed vreg row.
    return max(8, 32 // jnp.dtype(dtype).itemsize)


# ---------------------------------------------------------------------------
# Kernels
# ---------------------------------------------------------------------------
def _linear_kernel_single(x_ref, w_ref, b_ref, o_ref):
    # Whole problem in one block: no branches, no scratch.
    o_ref[...] = (
        jnp.dot(x_ref[...], w_ref[...], preferred_element_type=jnp.float32)
        + b_ref[...].astype(jnp.float32)
    ).astype(o_ref.dtype)


def _linear_kernel_f32out(x_ref, w_ref, b_ref, o_ref):
    # f32 output: accumulate directly into the resident output block.
    k = pl.program_id(2)

    @pl.when(k == 0)
    def _init():
        o_ref[...] = jnp.zeros_like(o_ref)

    o_ref[...] += jnp.dot(
        x_ref[...], w_ref[...], preferred_element_type=jnp.float32
    )

    @pl.when(k == pl.num_programs(2) - 1)
    def _finalize():
        o_ref[...] += b_ref[...].astype(jnp.float32)


def _linear_kernel_scratch(x_ref, w_ref, b_ref, o_ref, acc_ref):
    # Low-precision output: accumulate in an f32 VMEM scratch, cast once.
    k = pl.program_id(2)

    @pl.when(k == 0)
    def _init():
        acc_ref[...] = jnp.zeros_like(acc_ref)

    acc_ref[...] += jnp.dot(
        x_ref[...], w_ref[...], preferred_element_type=jnp.float32
    )

    @pl.when(k == pl.num_programs(2) - 1)
    def _finalize():
        o_ref[...] = (
            acc_ref[...] + b_ref[...].astype(jnp.float32)
        ).astype(o_ref.dtype)


# ---------------------------------------------------------------------------
# Wrapper
# ---------------------------------------------------------------------------
def linear_pallas(x2d, w_kn, bias):
    """y = x2d @ w_kn + bias via a Pallas kernel (fast small path + tiled path)."""
    M, K = x2d.shape
    Kw, N = w_kn.shape
    assert K == Kw, (K, Kw)

    out_dtype = x2d.dtype
    b_2d = bias.reshape(1, N)

    # ---------------- Fast path: single block, no padding, no branches. ----
    # Block dims that equal the full array dims are always legal, so the tiny
    # (M x 10) output just takes one masked store -- far cheaper than padding
    # and streaming a 128-wide weight copy every call.
    if M <= 256 and K <= 2048 and N <= 512:
        return pl.pallas_call(
            _linear_kernel_single,
            out_shape=jax.ShapeDtypeStruct((M, N), out_dtype),
            grid=(1,),
            in_specs=[
                pl.BlockSpec((M, K), lambda i: (0, 0)),
                pl.BlockSpec((K, N), lambda i: (0, 0)),
                pl.BlockSpec((1, N), lambda i: (0, 0)),
            ],
            out_specs=pl.BlockSpec((M, N), lambda i: (0, 0)),
            compiler_params=pltpu.CompilerParams(
                dimension_semantics=("arbitrary",)
            ),
        )(x2d, w_kn, b_2d)

    # ---------------- General tiled path (large shapes). -------------------
    sub = _sublane_min(x2d.dtype)
    elem = jnp.dtype(x2d.dtype).itemsize
    out_elem = jnp.dtype(out_dtype).itemsize

    # tm: fill the 256x256 MXU rows (v6e/v7x) when M is large.
    tm = _round_up(M, sub) if M <= 256 else 256
    # tk: single K step whenever K <= 2048 (fewer acc read-modify-writes).
    tk = min(_round_up(K, 128), 2048)
    # tn: full-dimension block for small/medium N (no weight/bias padding);
    # lane-dense 256-wide tiles only when N is genuinely large.
    if N <= 512:
        tn, N_pad = N, N
    else:
        tn = 256
        N_pad = _round_up(N, tn)

    M_pad = _round_up(M, tm)
    K_pad = _round_up(K, tk)

    # v7x megacore: make sure at least one "parallel" axis has >= 2 blocks.
    if M_pad // tm == 1 and N_pad // tn == 1 and tm >= 2 * sub:
        tm = _round_up(tm // 2, sub)
        M_pad = _round_up(M, tm)

    # Zero-padding keeps the matmul exact; padded rows/cols are sliced off.
    # NOTE: when N_pad > N the weight pad should ideally be hoisted to init
    # time by the caller; for N <= 512 (the common Linear-head case) no weight
    # or bias padding happens at all.
    x_p = x2d if (M_pad == M and K_pad == K) else jnp.pad(
        x2d, ((0, M_pad - M), (0, K_pad - K)))
    w_p = w_kn if (K_pad == K and N_pad == N) else jnp.pad(
        w_kn, ((0, K_pad - K), (0, N_pad - N)))
    b_p = b_2d if N_pad == N else jnp.pad(b_2d, ((0, 0), (0, N_pad - N)))

    grid = (M_pad // tm, N_pad // tn, K_pad // tk)

    # Explicit VMEM budget: double-buffered inputs + output + scratch, with
    # headroom, capped below v7x's 64 MiB physical VMEM.
    footprint = (
        2 * (tm * tk * elem + tk * tn * elem + tn * elem)
        + 2 * tm * tn * out_elem
        + tm * tn * 4
    )
    vmem_limit = int(min(max(2 * footprint, 32 << 20), 48 << 20))

    f32_out = jnp.dtype(out_dtype) == jnp.dtype(jnp.float32)
    kernel = _linear_kernel_f32out if f32_out else _linear_kernel_scratch
    scratch = [] if f32_out else [pltpu.VMEM((tm, tn), jnp.float32)]

    y_pad = pl.pallas_call(
        kernel,
        out_shape=jax.ShapeDtypeStruct((M_pad, N_pad), out_dtype),
        grid=grid,
        in_specs=[
            pl.BlockSpec((tm, tk), lambda i, j, k: (i, k)),
            pl.BlockSpec((tk, tn), lambda i, j, k: (k, j)),
            pl.BlockSpec((1, tn), lambda i, j, k: (0, j)),
        ],
        out_specs=pl.BlockSpec((tm, tn), lambda i, j, k: (i, j)),
        scratch_shapes=scratch,
        compiler_params=pltpu.CompilerParams(
            dimension_semantics=("parallel", "parallel", "arbitrary"),
            vmem_limit_bytes=vmem_limit,
        ),
    )(x_p, w_p, b_p)

    if M_pad == M and N_pad == N:
        return y_pad
    return y_pad[:M, :N]


def linear_net_forward(x_nchw, w_kn, bias):
    """LinearNet.forward: flatten x (keeping batch dim), then linear layer."""
    batch = x_nchw.shape[0]
    x2d = x_nchw.reshape(batch, -1)
    return linear_pallas(x2d, w_kn, bias)


if __name__ == "__main__":
    key = jax.random.PRNGKey(0)
    k_x, k_w, k_b = jax.random.split(key, 3)

    # Shapes consistent with the module: x = (batch=2, C=4, H=16, W=16)
    # -> num_inputs = 4*16*16 = 1024, num_outputs = 10.
    batch, C, H, W = 2, 4, 16, 16
    num_inputs = C * H * W
    num_outputs = 10

    x = jax.random.normal(k_x, (batch, C, H, W), dtype=jnp.float32)

    # Deterministic init mirroring nn.Linear defaults: U(-1/sqrt(K), 1/sqrt(K)).
    bound = 1.0 / (num_inputs ** 0.5)
    w_kn = jax.random.uniform(
        k_w, (num_inputs, num_outputs), dtype=jnp.float32,
        minval=-bound, maxval=bound)
    bias = jax.random.uniform(
        k_b, (num_outputs,), dtype=jnp.float32, minval=-bound, maxval=bound)

    y = linear_net_forward(x, w_kn, bias)
    y = jax.block_until_ready(y)

    # Sanity check against plain-JAX reference.
    y_ref = x.reshape(batch, -1) @ w_kn + bias
    assert y.shape == (batch, num_outputs)
    assert jnp.allclose(y, y_ref, atol=1e-4, rtol=1e-4)

    print("KERNEL_OK")
</pallas_src>

<mosaic_0001>
module attributes {stable_mosaic.version = 11 : i64} {
  func.func @_linear_kernel_single(%arg0: i32, %arg1: memref<2x1024xf32, #tpu.memory_space<vmem>>, %arg2: memref<1024x10xf32, #tpu.memory_space<vmem>>, %arg3: memref<1x10xf32, #tpu.memory_space<vmem>>, %arg4: memref<2x10xf32, #tpu.memory_space<vmem>>) attributes {dimension_semantics = [#tpu.dimension_semantics<arbitrary>], iteration_bounds = array<i64: 1>, scalar_prefetch = 0 : i64, scratch_operands = 0 : i64, tpu.core_type = #tpu.core_type<tc>, window_params = [{pipeline_mode = #tpu.pipeline_mode<synchronous>, transform_indices = @transform_0, window_bounds = array<i64: 2, 1024>}, {pipeline_mode = #tpu.pipeline_mode<synchronous>, transform_indices = @transform_1, window_bounds = array<i64: 1024, 10>}, {pipeline_mode = #tpu.pipeline_mode<synchronous>, transform_indices = @transform_2, window_bounds = array<i64: 1, 10>}, {pipeline_mode = #tpu.pipeline_mode<synchronous>, transform_indices = @transform_3, window_bounds = array<i64: 2, 10>}]} {
    %c0 = arith.constant 0 : index
    %c0_0 = arith.constant 0 : index
    %0 = vector.load %arg1[%c0, %c0_0] : memref<2x1024xf32, #tpu.memory_space<vmem>>, vector<2x1024xf32>
    %c0_1 = arith.constant 0 : index
    %c0_2 = arith.constant 0 : index
    %1 = vector.load %arg2[%c0_1, %c0_2] : memref<1024x10xf32, #tpu.memory_space<vmem>>, vector<1024x10xf32>
    %cst = arith.constant dense<0.000000e+00> : vector<2x10xf32>
    %2 = tpu.matmul %0, %1, %cst {dimension_numbers = #tpu.dot_dimension_numbers<[1], [0], [0], [1], [0, 0, 1, 1], [], []>} : vector<2x1024xf32>, vector<1024x10xf32>, vector<2x10xf32> -> vector<2x10xf32>
    %c0_3 = arith.constant 0 : index
    %c0_4 = arith.constant 0 : index
    %3 = vector.load %arg3[%c0_3, %c0_4] : memref<1x10xf32, #tpu.memory_space<vmem>>, vector<1x10xf32>
    %4 = vector.broadcast %3 : vector<1x10xf32> to vector<2x10xf32>
    %5 = arith.addf %2, %4 : vector<2x10xf32>
    %c0_5 = arith.constant 0 : index
    %c0_6 = arith.constant 0 : index
    %6 = vector.load %arg4[%c0_5, %c0_6] : memref<2x10xf32, #tpu.memory_space<vmem>>, vector<2x10xf32>
    tpu.vector_store %arg4[%c0_5, %c0_6], %5 {strides = array<i32>} : memref<2x10xf32, #tpu.memory_space<vmem>>, vector<2x10xf32>,
    return
  }
  func.func @transform_0(%arg0: i32) -> (i32, i32) {
    %c0_i32 = arith.constant 0 : i32
    %c0_i32_0 = arith.constant 0 : i32
    %c0_i32_1 = arith.constant 0 : i32
    return %c0_i32, %c0_i32_0 : i32, i32
  }
  func.func @transform_1(%arg0: i32) -> (i32, i32) {
    %c0_i32 = arith.constant 0 : i32
    %c0_i32_0 = arith.constant 0 : i32
    %c0_i32_1 = arith.constant 0 : i32
    return %c0_i32, %c0_i32_0 : i32, i32
  }
  func.func @transform_2(%arg0: i32) -> (i32, i32) {
    %c0_i32 = arith.constant 0 : i32
    %c0_i32_0 = arith.constant 0 : i32
    %c0_i32_1 = arith.constant 0 : i32
    return %c0_i32, %c0_i32_0 : i32, i32
  }
  func.func @transform_3(%arg0: i32) -> (i32, i32) {
    %c0_i32 = arith.constant 0 : i32
    %c0_i32_0 = arith.constant 0 : i32
    %c0_i32_1 = arith.constant 0 : i32
    return %c0_i32, %c0_i32_0 : i32, i32
  }
}

</mosaic_0001>

<llo_original>
// kernel: tpu_custom_call.1
$region0: #{tpu_custom_call.1}
  #allocation0 [shape = 'u32[]', space=smem, size = 0x4, offset = 0x4, fixed_abs, tag = 'smem constant byte address 0x4 - core index']
  #allocation1 [shape = 'u32[72,128]{1,0:T(1,128)}', space=vmem, size = 0x9000, scoped, tag = 'internal scratch']
  %s0 = inlined_call_operand.vmem [shape: f32[2,1024], index: 0, kind: input, shape index: {}]
  %s1 = inlined_call_operand.vmem [shape: f32[1024,10], index: 1, kind: input, shape index: {}]
  %s2 = inlined_call_operand.vmem [shape: f32[1,10], index: 2, kind: input, shape index: {}]
  %s3 = inlined_call_operand.hbm [shape: f32[2,10], index: 3, kind: output, shape index: {}]
  %s4 = sld [smem:[#allocation0]]
  $region22: #{tpu_custom_call.1} parent=0
    _
  %s6 = ssub.s32 1, %s4
  %s7 = scalar_select 0, %s6, %s4
  $region1: #{tpu_custom_call.1} parent=0
    #allocation2 [shape = 'u8[1024]{0}', space=vmem, size = 0x400, scoped, tag = 'output window, operand 0, single buffered']
    #allocation3 [shape = 's32[1]{0}', space=sflag, size = 0x4, scoped, tag = 'scoped memory for tpu_custom_call.1']
    %8 = vsyncpa [#allocation3], 0
    // Predicated region
    $region2: #{tpu_custom_call.1} parent=1 // pred_check
      _
    $region3: #{tpu_custom_call.1} parent=1 // pred_check_branch
      %10 = sbr.rel (0) target = $region5
    $region4: #{tpu_custom_call.1} parent=1 // pred_region
      _
    $region5: #{tpu_custom_call.1} parent=1 // pred_fallthru
      _
    // Predicated region
    $region6: #{tpu_custom_call.1} parent=1 // pred_check
      _
    $region7: #{tpu_custom_call.1} parent=1 // pred_check_branch
      %12 = sbr.rel (0) target = $region9
    $region8: #{tpu_custom_call.1} parent=1 // pred_region
      _
    $region9: #{tpu_custom_call.1} parent=1 // pred_fallthru
      _
    // Predicated region
    $region10: #{tpu_custom_call.1} parent=1 // pred_check
      _
    $region11: #{tpu_custom_call.1} parent=1 // pred_check_branch
      %14 = sbr.rel (0) target = $region13
    $region12: #{tpu_custom_call.1} parent=1 // pred_region
      _
    $region13: #{tpu_custom_call.1} parent=1 // pred_fallthru
      _
    %v15 = vld [vmem:[%s0] sm:$0xff]
    %v16 = vld [vmem:[%s0 + $0x8] sm:$0xff]
    %v17 = vld [vmem:[%s1] sm:$0xff]
    %v18 = vld [vmem:[%s1 + $0x8] sm:$0xff]
    %v19 = vld [vmem:[%s1 + $0x10] sm:$0xff]
    %v20 = vld [vmem:[%s1 + $0x18] sm:$0xff]
    %v21 = vld [vmem:[%s1 + $0x20] sm:$0xff]
    %v22 = vld [vmem:[%s1 + $0x28] sm:$0xff]
    %v23 = vld [vmem:[%s1 + $0x30] sm:$0xff]
    %v24 = vld [vmem:[%s1 + $0x38] sm:$0xff]
    %v25 = vld [vmem:[%s1 + $0x40] sm:$0xff]
    %v26 = vld [vmem:[%s1 + $0x48] sm:$0xff]
    %v27 = vld [vmem:[%s1 + $0x50] sm:$0xff]
    %v28 = vld [vmem:[%s1 + $0x58] sm:$0xff]
    %v29 = vld [vmem:[%s1 + $0x60] sm:$0xff]
    %v30 = vld [vmem:[%s1 + $0x68] sm:$0xff]
    %v31 = vld [vmem:[%s1 + $0x70] sm:$0xff]
    %v32 = vld [vmem:[%s1 + $0x78] sm:$0xff]
    %v33 = vld [vmem:[%s1 + $0x80] sm:$0xff]
    %v34 = vld [vmem:[%s1 + $0x88] sm:$0xff]
    %v35 = vld [vmem:[%s1 + $0x90] sm:$0xff]
    %v36 = vld [vmem:[%s1 + $0x98] sm:$0xff]
    %v37 = vld [vmem:[%s1 + $0xa0] sm:$0xff]
    %v38 = vld [vmem:[%s1 + $0xa8] sm:$0xff]
    %v39 = vld [vmem:[%s1 + $0xb0] sm:$0xff]
    %v40 = vld [vmem:[%s1 + $0xb8] sm:$0xff]
    %v41 = vld [vmem:[%s1 + $0xc0] sm:$0xff]
    %v42 = vld [vmem:[%s1 + $0xc8] sm:$0xff]
    %v43 = vld [vmem:[%s1 + $0xd0] sm:$0xff]
    %v44 = vld [vmem:[%s1 + $0xd8] sm:$0xff]
    %v45 = vld [vmem:[%s1 + $0xe0] sm:$0xff]
    %v46 = vld [vmem:[%s1 + $0xe8] sm:$0xff]
    %v47 = vld [vmem:[%s1 + $0xf0] sm:$0xff]
    %v48 = vld [vmem:[%s1 + $0xf8] sm:$0xff]
    %v49 = vld [vmem:[%s1 + $0x100] sm:$0xff]
    %v50 = vld [vmem:[%s1 + $0x108] sm:$0xff]
    %v51 = vld [vmem:[%s1 + $0x110] sm:$0xff]
    %v52 = vld [vmem:[%s1 + $0x118] sm:$0xff]
    %v53 = vld [vmem:[%s1 + $0x120] sm:$0xff]
    %v54 = vld [vmem:[%s1 + $0x128] sm:$0xff]
    %v55 = vld [vmem:[%s1 + $0x130] sm:$0xff]
    %v56 = vld [vmem:[%s1 + $0x138] sm:$0xff]
    %v57 = vld [vmem:[%s1 + $0x140] sm:$0xff]
    %v58 = vld [vmem:[%s1 + $0x148] sm:$0xff]
    %v59 = vld [vmem:[%s1 + $0x150] sm:$0xff]
    %v60 = vld [vmem:[%s1 + $0x158] sm:$0xff]
    %v61 = vld [vmem:[%s1 + $0x160] sm:$0xff]
    %v62 = vld [vmem:[%s1 + $0x168] sm:$0xff]
    %v63 = vld [vmem:[%s1 + $0x170] sm:$0xff]
    %v64 = vld [vmem:[%s1 + $0x178] sm:$0xff]
    %v65 = vld [vmem:[%s1 + $0x180] sm:$0xff]
    %v66 = vld [vmem:[%s1 + $0x188] sm:$0xff]
    %v67 = vld [vmem:[%s1 + $0x190] sm:$0xff]
    %v68 = vld [vmem:[%s1 + $0x198] sm:$0xff]
    %v69 = vld [vmem:[%s1 + $0x1a0] sm:$0xff]
    %v70 = vld [vmem:[%s1 + $0x1a8] sm:$0xff]
    %v71 = vld [vmem:[%s1 + $0x1b0] sm:$0xff]
    %v72 = vld [vmem:[%s1 + $0x1b8] sm:$0xff]
    %v73 = vld [vmem:[%s1 + $0x1c0] sm:$0xff]
    %v74 = vld [vmem:[%s1 + $0x1c8] sm:$0xff]
    %v75 = vld [vmem:[%s1 + $0x1d0] sm:$0xff]
    %v76 = vld [vmem:[%s1 + $0x1d8] sm:$0xff]
    %v77 = vld [vmem:[%s1 + $0x1e0] sm:$0xff]
    %v78 = vld [vmem:[%s1 + $0x1e8] sm:$0xff]
    %v79 = vld [vmem:[%s1 + $0x1f0] sm:$0xff]
    %v80 = vld [vmem:[%s1 + $0x1f8] sm:$0xff]
    %v81 = vld [vmem:[%s1 + $0x200] sm:$0xff]
    %v82 = vld [vmem:[%s1 + $0x208] sm:$0xff]
    %v83 = vld [vmem:[%s1 + $0x210] sm:$0xff]
    %v84 = vld [vmem:[%s1 + $0x218] sm:$0xff]
    %v85 = vld [vmem:[%s1 + $0x220] sm:$0xff]
    %v86 = vld [vmem:[%s1 + $0x228] sm:$0xff]
    %v87 = vld [vmem:[%s1 + $0x230] sm:$0xff]
    %v88 = vld [vmem:[%s1 + $0x238] sm:$0xff]
    %v89 = vld [vmem:[%s1 + $0x240] sm:$0xff]
    %v90 = vld [vmem:[%s1 + $0x248] sm:$0xff]
    %v91 = vld [vmem:[%s1 + $0x250] sm:$0xff]
    %v92 = vld [vmem:[%s1 + $0x258] sm:$0xff]
    %v93 = vld [vmem:[%s1 + $0x260] sm:$0xff]
    %v94 = vld [vmem:[%s1 + $0x268] sm:$0xff]
    %v95 = vld [vmem:[%s1 + $0x270] sm:$0xff]
    %v96 = vld [vmem:[%s1 + $0x278] sm:$0xff]
    %v97 = vld [vmem:[%s1 + $0x280] sm:$0xff]
    %v98 = vld [vmem:[%s1 + $0x288] sm:$0xff]
    %v99 = vld [vmem:[%s1 + $0x290] sm:$0xff]
    %v100 = vld [vmem:[%s1 + $0x298] sm:$0xff]
    %v101 = vld [vmem:[%s1 + $0x2a0] sm:$0xff]
    %v102 = vld [vmem:[%s1 + $0x2a8] sm:$0xff]
    %v103 = vld [vmem:[%s1 + $0x2b0] sm:$0xff]
    %v104 = vld [vmem:[%s1 + $0x2b8] sm:$0xff]
    %v105 = vld [vmem:[%s1 + $0x2c0] sm:$0xff]
    %v106 = vld [vmem:[%s1 + $0x2c8] sm:$0xff]
    %v107 = vld [vmem:[%s1 + $0x2d0] sm:$0xff]
    %v108 = vld [vmem:[%s1 + $0x2d8] sm:$0xff]
    %v109 = vld [vmem:[%s1 + $0x2e0] sm:$0xff]
    %v110 = vld [vmem:[%s1 + $0x2e8] sm:$0xff]
    %v111 = vld [vmem:[%s1 + $0x2f0] sm:$0xff]
    %v112 = vld [vmem:[%s1 + $0x2f8] sm:$0xff]
    %v113 = vld [vmem:[%s1 + $0x300] sm:$0xff]
    %v114 = vld [vmem:[%s1 + $0x308] sm:$0xff]
    %v115 = vld [vmem:[%s1 + $0x310] sm:$0xff]
    %v116 = vld [vmem:[%s1 + $0x318] sm:$0xff]
    %v117 = vld [vmem:[%s1 + $0x320] sm:$0xff]
    %v118 = vld [vmem:[%s1 + $0x328] sm:$0xff]
    %v119 = vld [vmem:[%s1 + $0x330] sm:$0xff]
    %v120 = vld [vmem:[%s1 + $0x338] sm:$0xff]
    %v121 = vld [vmem:[%s1 + $0x340] sm:$0xff]
    %v122 = vld [vmem:[%s1 + $0x348] sm:$0xff]
    %v123 = vld [vmem:[%s1 + $0x350] sm:$0xff]
    %v124 = vld [vmem:[%s1 + $0x358] sm:$0xff]
    %v125 = vld [vmem:[%s1 + $0x360] sm:$0xff]
    %v126 = vld [vmem:[%s1 + $0x368] sm:$0xff]
    %v127 = vld [vmem:[%s1 + $0x370] sm:$0xff]
    %v128 = vld [vmem:[%s1 + $0x378] sm:$0xff]
    %v129 = vld [vmem:[%s1 + $0x380] sm:$0xff]
    %v130 = vld [vmem:[%s1 + $0x388] sm:$0xff]
    %v131 = vld [vmem:[%s1 + $0x390] sm:$0xff]
    %v132 = vld [vmem:[%s1 + $0x398] sm:$0xff]
    %v133 = vld [vmem:[%s1 + $0x3a0] sm:$0xff]
    %v134 = vld [vmem:[%s1 + $0x3a8] sm:$0xff]
    %v135 = vld [vmem:[%s1 + $0x3b0] sm:$0xff]
    %v136 = vld [vmem:[%s1 + $0x3b8] sm:$0xff]
    %v137 = vld [vmem:[%s1 + $0x3c0] sm:$0xff]
    %v138 = vld [vmem:[%s1 + $0x3c8] sm:$0xff]
    %v139 = vld [vmem:[%s1 + $0x3d0] sm:$0xff]
    %v140 = vld [vmem:[%s1 + $0x3d8] sm:$0xff]
    %v141 = vld [vmem:[%s1 + $0x3e0] sm:$0xff]
    %v142 = vld [vmem:[%s1 + $0x3e8] sm:$0xff]
    %v143 = vld [vmem:[%s1 + $0x3f0] sm:$0xff]
    %v144 = vld [vmem:[%s1 + $0x3f8] sm:$0xff]
    %v145 = vld [vmem:[%s2] sm:$0x1]
    %v147 = vperm.slane %v145, 0
    %151 = vst [vmem:[#allocation1] ss:$4 sm:$0xff] %v15
    %s152 = scalar_lea.vmem [#allocation1], 32
    %153 = vst [vmem:[%s152] ss:$4 sm:$0xff] %v16
    %v154 = vld.sshfl [vmem:[#allocation1] sm:$0xff pattern:$0x73625140]
    %v155 = vld.sshfl [vmem:[#allocation1 + $0x8] sm:$0xff pattern:$0x73625140]
    %v156 = vld.sshfl [vmem:[#allocation1 + $0x10] sm:$0xff pattern:$0x73625140]
    %v157 = vld.sshfl [vmem:[#allocation1 + $0x18] sm:$0xff pattern:$0x73625140]
    %v158 = vld.sshfl [vmem:[#allocation1 + $0x20] sm:$0xff pattern:$0x73625140]
    %v159 = vld.sshfl [vmem:[#allocation1 + $0x28] sm:$0xff pattern:$0x73625140]
    %v160 = vld.sshfl [vmem:[#allocation1 + $0x30] sm:$0xff pattern:$0x73625140]
    %v161 = vld.sshfl [vmem:[#allocation1 + $0x38] sm:$0xff pattern:$0x73625140]
    %170 = vmatpush.msra.mxu0 %v32
    %171 = vmatpush.msra.mxu0 %v31
    %172 = vmatpush.msra.mxu0 %v30
    %173 = vmatpush.msra.mxu0 %v29
    %174 = vmatpush.msra.mxu0 %v28
    %175 = vmatpush.msra.mxu0 %v27
    %176 = vmatpush.msra.mxu0 %v26
    %177 = vmatpush.msra.mxu0 %v25
    %178 = vmatpush.msra.mxu0 %v24
    %179 = vmatpush.msra.mxu0 %v23
    %180 = vmatpush.msra.mxu0 %v22
    %181 = vmatpush.msra.mxu0 %v21
    %182 = vmatpush.msra.mxu0 %v20
    %183 = vmatpush.msra.mxu0 %v19
    %184 = vmatpush.msra.mxu0 %v18
    %185 = vmatpush.msra.mxu0 %v17
    %186 = vmatmul.f32.gmra.mxu0 %v154
    %v187 = vpop.f32.mrf.mxu0
    %v188 = vadd.f32 %v147, %v187
    %189 = vdwg.mxu0
    %190 = vmatpush.msra.mxu0 %v48
    %191 = vmatpush.msra.mxu0 %v47
    %192 = vmatpush.msra.mxu0 %v46
    %193 = vmatpush.msra.mxu0 %v45
    %194 = vmatpush.msra.mxu0 %v44
    %195 = vmatpush.msra.mxu0 %v43
    %196 = vmatpush.msra.mxu0 %v42
    %197 = vmatpush.msra.mxu0 %v41
    %198 = vmatpush.msra.mxu0 %v40
    %199 = vmatpush.msra.mxu0 %v39
    %200 = vmatpush.msra.mxu0 %v38
    %201 = vmatpush.msra.mxu0 %v37
    %202 = vmatpush.msra.mxu0 %v36
    %203 = vmatpush.msra.mxu0 %v35
    %204 = vmatpush.msra.mxu0 %v34
    %205 = vmatpush.msra.mxu0 %v33
    %206 = vmatmul.f32.gmra.mxu0 %v155
    %v207 = vpop.f32.mrf.mxu0
    %v208 = vadd.f32 %v188, %v207
    %209 = vdwg.mxu0
    %210 = vmatpush.msra.mxu0 %v64
    %211 = vmatpush.msra.mxu0 %v63
    %212 = vmatpush.msra.mxu0 %v62
    %213 = vmatpush.msra.mxu0 %v61
    %214 = vmatpush.msra.mxu0 %v60
    %215 = vmatpush.msra.mxu0 %v59
    %216 = vmatpush.msra.mxu0 %v58
    %217 = vmatpush.msra.mxu0 %v57
    %218 = vmatpush.msra.mxu0 %v56
    %219 = vmatpush.msra.mxu0 %v55
    %220 = vmatpush.msra.mxu0 %v54
    %221 = vmatpush.msra.mxu0 %v53
    %222 = vmatpush.msra.mxu0 %v52
    %223 = vmatpush.msra.mxu0 %v51
    %224 = vmatpush.msra.mxu0 %v50
    %225 = vmatpush.msra.mxu0 %v49
    %226 = vmatmul.f32.gmra.mxu0 %v156
    %v227 = vpop.f32.mrf.mxu0
    %v228 = vadd.f32 %v208, %v227
    %229 = vdwg.mxu0
    %230 = vmatpush.msra.mxu0 %v80
    %231 = vmatpush.msra.mxu0 %v79
    %232 = vmatpush.msra.mxu0 %v78
    %233 = vmatpush.msra.mxu0 %v77
    %234 = vmatpush.msra.mxu0 %v76
    %235 = vmatpush.msra.mxu0 %v75
    %236 = vmatpush.msra.mxu0 %v74
    %237 = vmatpush.msra.mxu0 %v73
    %238 = vmatpush.msra.mxu0 %v72
    %239 = vmatpush.msra.mxu0 %v71
    %240 = vmatpush.msra.mxu0 %v70
    %241 = vmatpush.msra.mxu0 %v69
    %242 = vmatpush.msra.mxu0 %v68
    %243 = vmatpush.msra.mxu0 %v67
    %244 = vmatpush.msra.mxu0 %v66
    %245 = vmatpush.msra.mxu0 %v65
    %246 = vmatmul.f32.gmra.mxu0 %v157
    %v247 = vpop.f32.mrf.mxu0
    %v248 = vadd.f32 %v228, %v247
    %249 = vdwg.mxu0
    %250 = vmatpush.msra.mxu0 %v96
    %251 = vmatpush.msra.mxu0 %v95
    %252 = vmatpush.msra.mxu0 %v94
    %253 = vmatpush.msra.mxu0 %v93
    %254 = vmatpush.msra.mxu0 %v92
    %255 = vmatpush.msra.mxu0 %v91
    %256 = vmatpush.msra.mxu0 %v90
    %257 = vmatpush.msra.mxu0 %v89
    %258 = vmatpush.msra.mxu0 %v88
    %259 = vmatpush.msra.mxu0 %v87
    %260 = vmatpush.msra.mxu0 %v86
    %261 = vmatpush.msra.mxu0 %v85
    %262 = vmatpush.msra.mxu0 %v84
    %263 = vmatpush.msra.mxu0 %v83
    %264 = vmatpush.msra.mxu0 %v82
    %265 = vmatpush.msra.mxu0 %v81
    %266 = vmatmul.f32.gmra.mxu0 %v158
    %v267 = vpop.f32.mrf.mxu0
    %v268 = vadd.f32 %v248, %v267
    %269 = vdwg.mxu0
    %270 = vmatpush.msra.mxu0 %v112
    %271 = vmatpush.msra.mxu0 %v111
    %272 = vmatpush.msra.mxu0 %v110
    %273 = vmatpush.msra.mxu0 %v109
    %274 = vmatpush.msra.mxu0 %v108
    %275 = vmatpush.msra.mxu0 %v107
    %276 = vmatpush.msra.mxu0 %v106
    %277 = vmatpush.msra.mxu0 %v105
    %278 = vmatpush.msra.mxu0 %v104
    %279 = vmatpush.msra.mxu0 %v103
    %280 = vmatpush.msra.mxu0 %v102
    %281 = vmatpush.msra.mxu0 %v101
    %282 = vmatpush.msra.mxu0 %v100
    %283 = vmatpush.msra.mxu0 %v99
    %284 = vmatpush.msra.mxu0 %v98
    %285 = vmatpush.msra.mxu0 %v97
    %286 = vmatmul.f32.gmra.mxu0 %v159
    %v287 = vpop.f32.mrf.mxu0
    %v288 = vadd.f32 %v268, %v287
    %289 = vdwg.mxu0
    %290 = vmatpush.msra.mxu0 %v128
    %291 = vmatpush.msra.mxu0 %v127
    %292 = vmatpush.msra.mxu0 %v126
    %293 = vmatpush.msra.mxu0 %v125
    %294 = vmatpush.msra.mxu0 %v124
    %295 = vmatpush.msra.mxu0 %v123
    %296 = vmatpush.msra.mxu0 %v122
    %297 = vmatpush.msra.mxu0 %v121
    %298 = vmatpush.msra.mxu0 %v120
    %299 = vmatpush.msra.mxu0 %v119
    %300 = vmatpush.msra.mxu0 %v118
    %301 = vmatpush.msra.mxu0 %v117
    %302 = vmatpush.msra.mxu0 %v116
    %303 = vmatpush.msra.mxu0 %v115
    %304 = vmatpush.msra.mxu0 %v114
    %305 = vmatpush.msra.mxu0 %v113
    %306 = vmatmul.f32.gmra.mxu0 %v160
    %v307 = vpop.f32.mrf.mxu0
    %v308 = vadd.f32 %v288, %v307
    %309 = vdwg.mxu0
    %310 = vmatpush.msra.mxu0 %v144
    %311 = vmatpush.msra.mxu0 %v143
    %312 = vmatpush.msra.mxu0 %v142
    %313 = vmatpush.msra.mxu0 %v141
    %314 = vmatpush.msra.mxu0 %v140
    %315 = vmatpush.msra.mxu0 %v139
    %316 = vmatpush.msra.mxu0 %v138
    %317 = vmatpush.msra.mxu0 %v137
    %318 = vmatpush.msra.mxu0 %v136
    %319 = vmatpush.msra.mxu0 %v135
    %320 = vmatpush.msra.mxu0 %v134
    %321 = vmatpush.msra.mxu0 %v133
    %322 = vmatpush.msra.mxu0 %v132
    %323 = vmatpush.msra.mxu0 %v131
    %324 = vmatpush.msra.mxu0 %v130
    %325 = vmatpush.msra.mxu0 %v129
    %326 = vmatmul.f32.gmra.mxu0 %v161
    %v327 = vpop.f32.mrf.mxu0
    %v328 = vadd.f32 %v308, %v327
    %329 = vdwg.mxu0
    %vm330 = vcmask 74752
    %331 = vst.msk [vmem:[#allocation2] sm:$0x3] %vm330, %v328
    // Predicated region
    $region14: #{tpu_custom_call.1} parent=1 // pred_check
      _
    $region15: #{tpu_custom_call.1} parent=1 // pred_check_branch
      %333 = sbr.rel (0) target = $region17
    $region16: #{tpu_custom_call.1} parent=1 // pred_region
      %335 = vsyncadd [#allocation3], 0
      %s337 = sshll.u32 [#allocation2], 4
      %s338 = int_to_ptr.vmem [resolvable:$true] %s337
      %s339 = sshll.u32 %s3, 4
      %s340 = int_to_ptr.hbm [resolvable:$true] %s339
      %342 = dma.vmem_to_hbm [thread:$0]  %s338, 32, %s340, [#allocation3]
    $region17: #{tpu_custom_call.1} parent=1 // pred_fallthru
      _
    // Predicated region
    $region18: #{tpu_custom_call.1} parent=1 // pred_check
      _
    $region19: #{tpu_custom_call.1} parent=1 // pred_check_branch
      %344 = sbr.rel (0) target = $region21
    $region20: #{tpu_custom_call.1} parent=1 // pred_region
      %346 = dma.done [#allocation3], 32
    $region21: #{tpu_custom_call.1} parent=1 // pred_fallthru
      _
    %347 = vsyncpa [#allocation3], 1

</llo_original>
